<compile_context>
chip_gen: v6e
topology: v6e:2x2x1
jax: 0.10.0
libtpu: 0.0.40
codegen_flags: <defaults>
</compile_context>

<pallas_src>
import jax
import jax.numpy as jnp
from jax.experimental import pallas as pl
from jax.experimental.pallas import tpu as pltpu


_INV_SQRT2 = 0.7071067811865476


def _gelu_exact(x):
    # PyTorch nn.GELU() default is the exact erf-based GELU.
    return 0.5 * x * (1.0 + jax.lax.erf(x * _INV_SQRT2))


def recalibration_kernel(x_ref, w1_ref, b1_ref, w2_ref, b2_ref,
                         w3_ref, b3_ref, w4_ref, b4_ref, o_ref):
    # TB batch elements per grid step.
    x = x_ref[...].astype(jnp.float32)                    # (TB, C, D)

    m = jnp.mean(x, axis=1)                               # (TB, D) torch.mean(dim=1)
    mx = jnp.max(x, axis=1)                               # (TB, D) torch.max(dim=1).values

    # fre branch: gelu(fre_linear2(fre_linear1(mean)))
    h1 = jnp.dot(m, w1_ref[...], preferred_element_type=jnp.float32) + b1_ref[...]
    y1 = _gelu_exact(
        jnp.dot(h1, w2_ref[...], preferred_element_type=jnp.float32) + b2_ref[...])

    # channel branch: gelu(channel_linear2(channel_linear1(max)))
    h2 = jnp.dot(mx, w3_ref[...], preferred_element_type=jnp.float32) + b3_ref[...]
    y2 = _gelu_exact(
        jnp.dot(h2, w4_ref[...], preferred_element_type=jnp.float32) + b4_ref[...])

    # x*y1 + x*y2 + x == x * (1 + y1 + y2); y1/y2 broadcast over the channel axis.
    scale = (1.0 + y1 + y2)[:, None, :]                   # (TB, 1, D)
    o_ref[...] = (x * scale).astype(o_ref.dtype)


def _choose_batch_block(B, C, D, H, itemsize, vmem_budget=24 * 1024 * 1024):
    """Largest divisor of B whose (double-buffered) x/out blocks fit the budget."""
    # Resident weights + biases, double-buffered by the default pipeline.
    weight_bytes = 2 * 2 * (D * H + H + H * D + D) * 4
    per_batch = 2 * 2 * C * D * itemsize                  # x block + out block, 2 buffers
    budget = max(vmem_budget - weight_bytes, per_batch)
    cap = max(1, min(int(budget // per_batch), B))
    tb = 1
    for t in range(1, cap + 1):
        if B % t == 0:
            tb = t
    return tb


def recalibration(x, params):
    B, C, D = x.shape
    w1, b1, w2, b2, w3, b3, w4, b4 = params
    H = w1.shape[1]

    TB = _choose_batch_block(B, C, D, H, x.dtype.itemsize)

    x_spec = pl.BlockSpec((TB, C, D), lambda b: (b, 0, 0))
    w_DH = pl.BlockSpec((D, H), lambda b: (0, 0))
    w_HD = pl.BlockSpec((H, D), lambda b: (0, 0))
    b_H = pl.BlockSpec((1, H), lambda b: (0, 0))
    b_D = pl.BlockSpec((1, D), lambda b: (0, 0))

    return pl.pallas_call(
        recalibration_kernel,
        out_shape=jax.ShapeDtypeStruct((B, C, D), x.dtype),
        grid_spec=pl.GridSpec(
            grid=(B // TB,),
            in_specs=[x_spec, w_DH, b_H, w_HD, b_D, w_DH, b_H, w_HD, b_D],
            out_specs=x_spec,
        ),
        compiler_params=pltpu.CompilerParams(
            dimension_semantics=("parallel",)),
    )(x, w1, b1, w2, b2, w3, b3, w4, b4)


def _init_params(key, D):
    H = 4 * D
    ks = jax.random.split(key, 8)
    scale_in = 1.0 / jnp.sqrt(D)
    scale_h = 1.0 / jnp.sqrt(H)
    w1 = jax.random.normal(ks[0], (D, H), jnp.float32) * scale_in   # fre_linear1
    b1 = jax.random.normal(ks[1], (1, H), jnp.float32) * scale_in
    w2 = jax.random.normal(ks[2], (H, D), jnp.float32) * scale_h    # fre_linear2
    b2 = jax.random.normal(ks[3], (1, D), jnp.float32) * scale_h
    w3 = jax.random.normal(ks[4], (D, H), jnp.float32) * scale_in   # channel_linear1
    b3 = jax.random.normal(ks[5], (1, H), jnp.float32) * scale_in
    w4 = jax.random.normal(ks[6], (H, D), jnp.float32) * scale_h    # channel_linear2
    b4 = jax.random.normal(ks[7], (1, D), jnp.float32) * scale_h
    return (w1, b1, w2, b2, w3, b3, w4, b4)


def _reference(x, params):
    w1, b1, w2, b2, w3, b3, w4, b4 = params
    m = jnp.mean(x, axis=1, keepdims=True)
    mx = jnp.max(x, axis=1, keepdims=True)
    y1 = _gelu_exact((m @ w1 + b1) @ w2 + b2)
    y2 = _gelu_exact((mx @ w3 + b3) @ w4 + b4)
    return x * y1 + x * y2 + x


if __name__ == "__main__":
    B, C, D = 2, 12, 16   # C=12 matches the (unused) Conv1d channel count; D=img_size[1]
    key = jax.random.PRNGKey(0)
    kx, kp = jax.random.split(key)
    x = jax.random.normal(kx, (B, C, D), jnp.float32)
    params = _init_params(kp, D)

    out = jax.block_until_ready(recalibration(x, params))
    ref = _reference(x, params)

    assert out.shape == (B, C, D)
    assert jnp.allclose(out, ref, atol=1e-5, rtol=1e-5), float(jnp.max(jnp.abs(out - ref)))
    print("KERNEL_OK")
</pallas_src>

<mosaic_0001>
module attributes {stable_mosaic.version = 11 : i64} {
  func.func @recalibration_kernel(%arg0: i32, %arg1: memref<2x12x16xf32, #tpu.memory_space<vmem>>, %arg2: memref<16x64xf32, #tpu.memory_space<vmem>>, %arg3: memref<1x64xf32, #tpu.memory_space<vmem>>, %arg4: memref<64x16xf32, #tpu.memory_space<vmem>>, %arg5: memref<1x16xf32, #tpu.memory_space<vmem>>, %arg6: memref<16x64xf32, #tpu.memory_space<vmem>>, %arg7: memref<1x64xf32, #tpu.memory_space<vmem>>, %arg8: memref<64x16xf32, #tpu.memory_space<vmem>>, %arg9: memref<1x16xf32, #tpu.memory_space<vmem>>, %arg10: memref<2x12x16xf32, #tpu.memory_space<vmem>>) attributes {dimension_semantics = [#tpu.dimension_semantics<parallel>], iteration_bounds = array<i64: 1>, scalar_prefetch = 0 : i64, scratch_operands = 0 : i64, tpu.core_type = #tpu.core_type<tc>, window_params = [{transform_indices = @transform_0, window_bounds = array<i64: 2, 12, 16>}, {pipeline_mode = #tpu.pipeline_mode<synchronous>, transform_indices = @transform_1, window_bounds = array<i64: 16, 64>}, {pipeline_mode = #tpu.pipeline_mode<synchronous>, transform_indices = @transform_2, window_bounds = array<i64: 1, 64>}, {pipeline_mode = #tpu.pipeline_mode<synchronous>, transform_indices = @transform_3, window_bounds = array<i64: 64, 16>}, {pipeline_mode = #tpu.pipeline_mode<synchronous>, transform_indices = @transform_4, window_bounds = array<i64: 1, 16>}, {pipeline_mode = #tpu.pipeline_mode<synchronous>, transform_indices = @transform_5, window_bounds = array<i64: 16, 64>}, {pipeline_mode = #tpu.pipeline_mode<synchronous>, transform_indices = @transform_6, window_bounds = array<i64: 1, 64>}, {pipeline_mode = #tpu.pipeline_mode<synchronous>, transform_indices = @transform_7, window_bounds = array<i64: 64, 16>}, {pipeline_mode = #tpu.pipeline_mode<synchronous>, transform_indices = @transform_8, window_bounds = array<i64: 1, 16>}, {transform_indices = @transform_9, window_bounds = array<i64: 2, 12, 16>}]} {
    %c0 = arith.constant 0 : index
    %c0_0 = arith.constant 0 : index
    %c0_1 = arith.constant 0 : index
    %0 = vector.load %arg1[%c0, %c0_0, %c0_1] : memref<2x12x16xf32, #tpu.memory_space<vmem>>, vector<2x12x16xf32>
    %cst = arith.constant dense<0.000000e+00> : vector<2x16xf32>
    %1 = vector.multi_reduction <add>, %0, %cst [1] : vector<2x12x16xf32> to vector<2x16xf32>
    %cst_2 = arith.constant 1.200000e+01 : f32
    %2 = vector.broadcast %cst_2 : f32 to vector<2x16xf32>
    %3 = arith.divf %1, %2 : vector<2x16xf32>
    %cst_3 = arith.constant dense<0xFF800000> : vector<2x16xf32>
    %4 = vector.multi_reduction <maximumf>, %0, %cst_3 [1] : vector<2x12x16xf32> to vector<2x16xf32>
    %c0_4 = arith.constant 0 : index
    %c0_5 = arith.constant 0 : index
    %5 = vector.load %arg2[%c0_4, %c0_5] : memref<16x64xf32, #tpu.memory_space<vmem>>, vector<16x64xf32>
    %cst_6 = arith.constant dense<0.000000e+00> : vector<2x64xf32>
    %6 = tpu.matmul %3, %5, %cst_6 {dimension_numbers = #tpu.dot_dimension_numbers<[1], [0], [0], [1], [0, 0, 1, 1], [], []>} : vector<2x16xf32>, vector<16x64xf32>, vector<2x64xf32> -> vector<2x64xf32>
    %c0_7 = arith.constant 0 : index
    %c0_8 = arith.constant 0 : index
    %7 = vector.load %arg3[%c0_7, %c0_8] : memref<1x64xf32, #tpu.memory_space<vmem>>, vector<1x64xf32>
    %8 = vector.broadcast %7 : vector<1x64xf32> to vector<2x64xf32>
    %9 = arith.addf %6, %8 : vector<2x64xf32>
    %c0_9 = arith.constant 0 : index
    %c0_10 = arith.constant 0 : index
    %10 = vector.load %arg4[%c0_9, %c0_10] : memref<64x16xf32, #tpu.memory_space<vmem>>, vector<64x16xf32>
    %cst_11 = arith.constant dense<0.000000e+00> : vector<2x16xf32>
    %11 = tpu.matmul %9, %10, %cst_11 {dimension_numbers = #tpu.dot_dimension_numbers<[1], [0], [0], [1], [0, 0, 1, 1], [], []>} : vector<2x64xf32>, vector<64x16xf32>, vector<2x16xf32> -> vector<2x16xf32>
    %c0_12 = arith.constant 0 : index
    %c0_13 = arith.constant 0 : index
    %12 = vector.load %arg5[%c0_12, %c0_13] : memref<1x16xf32, #tpu.memory_space<vmem>>, vector<1x16xf32>
    %13 = vector.broadcast %12 : vector<1x16xf32> to vector<2x16xf32>
    %14 = arith.addf %11, %13 : vector<2x16xf32>
    %cst_14 = arith.constant 5.000000e-01 : f32
    %15 = vector.broadcast %cst_14 : f32 to vector<2x16xf32>
    %16 = arith.mulf %15, %14 : vector<2x16xf32>
    %cst_15 = arith.constant 0.707106769 : f32
    %17 = vector.broadcast %cst_15 : f32 to vector<2x16xf32>
    %18 = arith.mulf %14, %17 : vector<2x16xf32>
    %19 = math.erf %18 : vector<2x16xf32>
    %cst_16 = arith.constant 1.000000e+00 : f32
    %20 = vector.broadcast %cst_16 : f32 to vector<2x16xf32>
    %21 = arith.addf %20, %19 : vector<2x16xf32>
    %22 = arith.mulf %16, %21 : vector<2x16xf32>
    %c0_17 = arith.constant 0 : index
    %c0_18 = arith.constant 0 : index
    %23 = vector.load %arg6[%c0_17, %c0_18] : memref<16x64xf32, #tpu.memory_space<vmem>>, vector<16x64xf32>
    %cst_19 = arith.constant dense<0.000000e+00> : vector<2x64xf32>
    %24 = tpu.matmul %4, %23, %cst_19 {dimension_numbers = #tpu.dot_dimension_numbers<[1], [0], [0], [1], [0, 0, 1, 1], [], []>} : vector<2x16xf32>, vector<16x64xf32>, vector<2x64xf32> -> vector<2x64xf32>
    %c0_20 = arith.constant 0 : index
    %c0_21 = arith.constant 0 : index
    %25 = vector.load %arg7[%c0_20, %c0_21] : memref<1x64xf32, #tpu.memory_space<vmem>>, vector<1x64xf32>
    %26 = vector.broadcast %25 : vector<1x64xf32> to vector<2x64xf32>
    %27 = arith.addf %24, %26 : vector<2x64xf32>
    %c0_22 = arith.constant 0 : index
    %c0_23 = arith.constant 0 : index
    %28 = vector.load %arg8[%c0_22, %c0_23] : memref<64x16xf32, #tpu.memory_space<vmem>>, vector<64x16xf32>
    %cst_24 = arith.constant dense<0.000000e+00> : vector<2x16xf32>
    %29 = tpu.matmul %27, %28, %cst_24 {dimension_numbers = #tpu.dot_dimension_numbers<[1], [0], [0], [1], [0, 0, 1, 1], [], []>} : vector<2x64xf32>, vector<64x16xf32>, vector<2x16xf32> -> vector<2x16xf32>
    %c0_25 = arith.constant 0 : index
    %c0_26 = arith.constant 0 : index
    %30 = vector.load %arg9[%c0_25, %c0_26] : memref<1x16xf32, #tpu.memory_space<vmem>>, vector<1x16xf32>
    %31 = vector.broadcast %30 : vector<1x16xf32> to vector<2x16xf32>
    %32 = arith.addf %29, %31 : vector<2x16xf32>
    %cst_27 = arith.constant 5.000000e-01 : f32
    %33 = vector.broadcast %cst_27 : f32 to vector<2x16xf32>
    %34 = arith.mulf %33, %32 : vector<2x16xf32>
    %cst_28 = arith.constant 0.707106769 : f32
    %35 = vector.broadcast %cst_28 : f32 to vector<2x16xf32>
    %36 = arith.mulf %32, %35 : vector<2x16xf32>
    %37 = math.erf %36 : vector<2x16xf32>
    %cst_29 = arith.constant 1.000000e+00 : f32
    %38 = vector.broadcast %cst_29 : f32 to vector<2x16xf32>
    %39 = arith.addf %38, %37 : vector<2x16xf32>
    %40 = arith.mulf %34, %39 : vector<2x16xf32>
    %cst_30 = arith.constant 1.000000e+00 : f32
    %41 = vector.broadcast %cst_30 : f32 to vector<2x16xf32>
    %42 = arith.addf %41, %22 : vector<2x16xf32>
    %43 = arith.addf %42, %40 : vector<2x16xf32>
    %44 = vector.shape_cast %43 : vector<2x16xf32> to vector<2x1x16xf32>
    %45 = vector.broadcast %44 : vector<2x1x16xf32> to vector<2x12x16xf32>
    %46 = arith.mulf %0, %45 : vector<2x12x16xf32>
    %c0_31 = arith.constant 0 : index
    %c0_32 = arith.constant 0 : index
    %c0_33 = arith.constant 0 : index
    %47 = vector.load %arg10[%c0_31, %c0_32, %c0_33] : memref<2x12x16xf32, #tpu.memory_space<vmem>>, vector<2x12x16xf32>
    tpu.vector_store %arg10[%c0_31, %c0_32, %c0_33], %46 {strides = array<i32>} : memref<2x12x16xf32, #tpu.memory_space<vmem>>, vector<2x12x16xf32>,
    return
  }
  func.func @transform_0(%arg0: i32) -> (i32, i32, i32) {
    %c0_i32 = arith.constant 0 : i32
    %c0_i32_0 = arith.constant 0 : i32
    %c0_i32_1 = arith.constant 0 : i32
    return %arg0, %c0_i32, %c0_i32_0 : i32, i32, i32
  }
  func.func @transform_1(%arg0: i32) -> (i32, i32) {
    %c0_i32 = arith.constant 0 : i32
    %c0_i32_0 = arith.constant 0 : i32
    %c0_i32_1 = arith.constant 0 : i32
    return %c0_i32, %c0_i32_0 : i32, i32
  }
  func.func @transform_2(%arg0: i32) -> (i32, i32) {
    %c0_i32 = arith.constant 0 : i32
    %c0_i32_0 = arith.constant 0 : i32
    %c0_i32_1 = arith.constant 0 : i32
    return %c0_i32, %c0_i32_0 : i32, i32
  }
  func.func @transform_3(%arg0: i32) -> (i32, i32) {
    %c0_i32 = arith.constant 0 : i32
    %c0_i32_0 = arith.constant 0 : i32
    %c0_i32_1 = arith.constant 0 : i32
    return %c0_i32, %c0_i32_0 : i32, i32
  }
  func.func @transform_4(%arg0: i32) -> (i32, i32) {
    %c0_i32 = arith.constant 0 : i32
    %c0_i32_0 = arith.constant 0 : i32
    %c0_i32_1 = arith.constant 0 : i32
    return %c0_i32, %c0_i32_0 : i32, i32
  }
  func.func @transform_5(%arg0: i32) -> (i32, i32) {
    %c0_i32 = arith.constant 0 : i32
    %c0_i32_0 = arith.constant 0 : i32
    %c0_i32_1 = arith.constant 0 : i32
    return %c0_i32, %c0_i32_0 : i32, i32
  }
  func.func @transform_6(%arg0: i32) -> (i32, i32) {
    %c0_i32 = arith.constant 0 : i32
    %c0_i32_0 = arith.constant 0 : i32
    %c0_i32_1 = arith.constant 0 : i32
    return %c0_i32, %c0_i32_0 : i32, i32
  }
  func.func @transform_7(%arg0: i32) -> (i32, i32) {
    %c0_i32 = arith.constant 0 : i32
    %c0_i32_0 = arith.constant 0 : i32
    %c0_i32_1 = arith.constant 0 : i32
    return %c0_i32, %c0_i32_0 : i32, i32
  }
  func.func @transform_8(%arg0: i32) -> (i32, i32) {
    %c0_i32 = arith.constant 0 : i32
    %c0_i32_0 = arith.constant 0 : i32
    %c0_i32_1 = arith.constant 0 : i32
    return %c0_i32, %c0_i32_0 : i32, i32
  }
  func.func @transform_9(%arg0: i32) -> (i32, i32, i32) {
    %c0_i32 = arith.constant 0 : i32
    %c0_i32_0 = arith.constant 0 : i32
    %c0_i32_1 = arith.constant 0 : i32
    return %arg0, %c0_i32, %c0_i32_0 : i32, i32, i32
  }
}

</mosaic_0001>

<llo_original>
// kernel: tpu_custom_call.1
$region0: #{tpu_custom_call.1}
  #allocation0 [shape = 'u32[]', space=smem, size = 0x4, offset = 0x4, fixed_abs, tag = 'smem constant byte address 0x4 - core index']
  #allocation1 [shape = 'u32[144,128]{1,0:T(1,128)}', space=vmem, size = 0x12000, scoped, tag = 'internal scratch']
  %s0 = inlined_call_operand.vmem [shape: f32[2,12,16], index: 0, kind: input, shape index: {}]
  %s1 = inlined_call_operand.vmem [shape: f32[16,64], index: 1, kind: input, shape index: {}]
  %s2 = inlined_call_operand.vmem [shape: f32[1,64], index: 2, kind: input, shape index: {}]
  %s3 = inlined_call_operand.vmem [shape: f32[64,16], index: 3, kind: input, shape index: {}]
  %s4 = inlined_call_operand.vmem [shape: f32[1,16], index: 4, kind: input, shape index: {}]
  %s5 = inlined_call_operand.vmem [shape: f32[16,64], index: 5, kind: input, shape index: {}]
  %s6 = inlined_call_operand.vmem [shape: f32[1,64], index: 6, kind: input, shape index: {}]
  %s7 = inlined_call_operand.vmem [shape: f32[64,16], index: 7, kind: input, shape index: {}]
  %s8 = inlined_call_operand.vmem [shape: f32[1,16], index: 8, kind: input, shape index: {}]
  %s9 = inlined_call_operand.vmem [shape: f32[2,12,16], index: 9, kind: output, shape index: {}]
  %s10 = sld [smem:[#allocation0]]
  $region46: #{tpu_custom_call.1} parent=0
    _
  %s12 = ssub.s32 1, %s10
  %s13 = scalar_select 0, %s12, %s10
  // Predicated region
  $region2: #{tpu_custom_call.1} parent=0 // pred_check
    _
  $region3: #{tpu_custom_call.1} parent=0 // pred_check_branch
    %15 = sbr.rel (0) target = $region5
  $region4: #{tpu_custom_call.1} parent=0 // pred_region
    _
  $region5: #{tpu_custom_call.1} parent=0 // pred_fallthru
    _
  // Predicated region
  $region6: #{tpu_custom_call.1} parent=0 // pred_check
    _
  $region7: #{tpu_custom_call.1} parent=0 // pred_check_branch
    %17 = sbr.rel (0) target = $region9
  $region8: #{tpu_custom_call.1} parent=0 // pred_region
    _
  $region9: #{tpu_custom_call.1} parent=0 // pred_fallthru
    _
  // Predicated region
  $region10: #{tpu_custom_call.1} parent=0 // pred_check
    _
  $region11: #{tpu_custom_call.1} parent=0 // pred_check_branch
    %19 = sbr.rel (0) target = $region13
  $region12: #{tpu_custom_call.1} parent=0 // pred_region
    _
  $region13: #{tpu_custom_call.1} parent=0 // pred_fallthru
    _
  // Predicated region
  $region14: #{tpu_custom_call.1} parent=0 // pred_check
    _
  $region15: #{tpu_custom_call.1} parent=0 // pred_check_branch
    %21 = sbr.rel (0) target = $region17
  $region16: #{tpu_custom_call.1} parent=0 // pred_region
    _
  $region17: #{tpu_custom_call.1} parent=0 // pred_fallthru
    _
  // Predicated region
  $region18: #{tpu_custom_call.1} parent=0 // pred_check
    _
  $region19: #{tpu_custom_call.1} parent=0 // pred_check_branch
    %23 = sbr.rel (0) target = $region21
  $region20: #{tpu_custom_call.1} parent=0 // pred_region
    _
  $region21: #{tpu_custom_call.1} parent=0 // pred_fallthru
    _
  // Predicated region
  $region22: #{tpu_custom_call.1} parent=0 // pred_check
    _
  $region23: #{tpu_custom_call.1} parent=0 // pred_check_branch
    %25 = sbr.rel (0) target = $region25
  $region24: #{tpu_custom_call.1} parent=0 // pred_region
    _
  $region25: #{tpu_custom_call.1} parent=0 // pred_fallthru
    _
  // Predicated region
  $region26: #{tpu_custom_call.1} parent=0 // pred_check
    _
  $region27: #{tpu_custom_call.1} parent=0 // pred_check_branch
    %27 = sbr.rel (0) target = $region29
  $region28: #{tpu_custom_call.1} parent=0 // pred_region
    _
  $region29: #{tpu_custom_call.1} parent=0 // pred_fallthru
    _
  // Predicated region
  $region30: #{tpu_custom_call.1} parent=0 // pred_check
    _
  $region31: #{tpu_custom_call.1} parent=0 // pred_check_branch
    %29 = sbr.rel (0) target = $region33
  $region32: #{tpu_custom_call.1} parent=0 // pred_region
    _
  $region33: #{tpu_custom_call.1} parent=0 // pred_fallthru
    _
  // Predicated region
  $region34: #{tpu_custom_call.1} parent=0 // pred_check
    _
  $region35: #{tpu_custom_call.1} parent=0 // pred_check_branch
    %31 = sbr.rel (0) target = $region37
  $region36: #{tpu_custom_call.1} parent=0 // pred_region
    _
  $region37: #{tpu_custom_call.1} parent=0 // pred_fallthru
    _
  %v32 = vld [vmem:[%s0] sm:$0xff]
  %v33 = vld [vmem:[%s0 + $0x8] sm:$0xf]
  %v34 = vld [vmem:[%s0 + $0x10] sm:$0xff]
  %v35 = vld [vmem:[%s0 + $0x18] sm:$0xf]
  %vm36 = vcmask 130048
  %v37 = vsel %vm36, %v32, 0.0
  %vm38 = vcmask 125952
  %v39 = vsel %vm38, %v33, 0.0
  %v40 = vadd.f32 %v37, %v39
  %v41 = vrot.slane %v40, 4
  %v42 = vadd.f32 %v40, %v41
  %v43 = vrot.slane %v42, 2
  %v44 = vadd.f32 %v42, %v43
  %v45 = vrot.slane %v44, 1
  %v46 = vadd.f32 %v44, %v45
  %v47 = vsel %vm36, %v34, 0.0
  %v48 = vsel %vm38, %v35, 0.0
  %v49 = vadd.f32 %v47, %v48
  %v50 = vrot.slane %v49, 4
  %v51 = vadd.f32 %v49, %v50
  %v52 = vrot.slane %v51, 2
  %v53 = vadd.f32 %v51, %v52
  %v54 = vrot.slane %v53, 1
  %v55 = vadd.f32 %v53, %v54
  %v56 = vrcp.pop 12.0
  %v57 = vmul.f32 %v46, %v56
  %v58 = vmul.f32 %v55, %v56
  %v59 = vsel %vm36, %v32, -inf
  %v60 = vsel %vm38, %v33, -inf
  %v61 = vmax.f32 %v59, %v60
  %v62 = vrot.slane %v61, 4
  %v63 = vmax.f32 %v61, %v62
  %v64 = vrot.slane %v63, 2
  %v65 = vmax.f32 %v63, %v64
  %v66 = vrot.slane %v65, 1
  %v67 = vmax.f32 %v65, %v66
  %v68 = vsel %vm36, %v34, -inf
  %v69 = vsel %vm38, %v35, -inf
  %v70 = vmax.f32 %v68, %v69
  %v71 = vrot.slane %v70, 4
  %v72 = vmax.f32 %v70, %v71
  %v73 = vrot.slane %v72, 2
  %v74 = vmax.f32 %v72, %v73
  %v75 = vrot.slane %v74, 1
  %v76 = vmax.f32 %v74, %v75
  %v77 = vld [vmem:[%s1] sm:$0xff]
  %v78 = vld [vmem:[%s1 + $0x8] sm:$0xff]
  %v79 = vld [vmem:[%s2] sm:$0x1]
  %v81 = vlaneseq
  %v82 = vshrl.u32 %v81, 7
  %v83 = vsub.s32 0, %v82
  %v84 = vrot.slane %v79, %v83
  %vm88 = vcmask 1041409
  %v89 = vsel %vm88, %v58, %v57
  %v90 = vsel %vm36, %v89, 0
  %92 = vmatprep.subr.mxu0 0.0
  %93 = vmatpush1.msra.mxu0 0.0
  %94 = vmatprep.subr.mxu0 0.0
  %95 = vmatpush1.msra.mxu0 0.0
  %96 = vmatprep.subr.mxu0 0.0
  %97 = vmatpush1.msra.mxu0 0.0
  %98 = vmatprep.subr.mxu0 0.0
  %99 = vmatpush1.msra.mxu0 0.0
  %100 = vmatprep.subr.mxu0 0.0
  %101 = vmatpush1.msra.mxu0 0.0
  %102 = vmatprep.subr.mxu0 0.0
  %103 = vmatpush1.msra.mxu0 0.0
  %104 = vmatprep.subr.mxu0 0.0
  %105 = vmatpush1.msra.mxu0 0.0
  %106 = vmatprep.subr.mxu0 0.0
  %107 = vmatpush1.msra.mxu0 0.0
  %108 = vmatprep.subr.mxu0 0.0
  %109 = vmatpush1.msra.mxu0 0.0
  %110 = vmatprep.subr.mxu0 0.0
  %111 = vmatpush1.msra.mxu0 0.0
  %112 = vmatprep.subr.mxu0 0.0
  %113 = vmatpush1.msra.mxu0 0.0
  %114 = vmatprep.subr.mxu0 0.0
  %115 = vmatpush1.msra.mxu0 0.0
  %116 = vmatprep.subr.mxu0 0.0
  %117 = vmatpush1.msra.mxu0 0.0
  %118 = vmatprep.subr.mxu0 0.0
  %119 = vmatpush1.msra.mxu0 0.0
  %120 = vmatprep.subr.mxu0 0.0
  %121 = vmatpush1.msra.mxu0 %v78
  %122 = vmatprep.subr.mxu0 0.0
  %123 = vmatpush1.msra.mxu0 %v77
  %124 = vmatprep.subr.mxu0 0.0
  %125 = vmatpush2.msra.mxu0 0.0
  %126 = vmatprep.subr.mxu0 0.0
  %127 = vmatpush2.msra.mxu0 0.0
  %128 = vmatprep.subr.mxu0 0.0
  %129 = vmatpush2.msra.mxu0 0.0
  %130 = vmatprep.subr.mxu0 0.0
  %131 = vmatpush2.msra.mxu0 0.0
  %132 = vmatprep.subr.mxu0 0.0
  %133 = vmatpush2.msra.mxu0 0.0
  %134 = vmatprep.subr.mxu0 0.0
  %135 = vmatpush2.msra.mxu0 0.0
  %136 = vmatprep.subr.mxu0 0.0
  %137 = vmatpush2.msra.mxu0 0.0
  %138 = vmatprep.subr.mxu0 0.0
  %139 = vmatpush2.msra.mxu0 0.0
  %140 = vmatprep.subr.mxu0 0.0
  %141 = vmatpush2.msra.mxu0 0.0
  %142 = vmatprep.subr.mxu0 0.0
  %143 = vmatpush2.msra.mxu0 0.0
  %144 = vmatprep.subr.mxu0 0.0
  %145 = vmatpush2.msra.mxu0 0.0
  %146 = vmatprep.subr.mxu0 0.0
  %147 = vmatpush2.msra.mxu0 0.0
  %148 = vmatprep.subr.mxu0 0.0
  %149 = vmatpush2.msra.mxu0 0.0
  %150 = vmatprep.subr.mxu0 0.0
  %151 = vmatpush2.msra.mxu0 0.0
  %152 = vmatprep.subr.mxu0 0.0
  %153 = vmatpush2.msra.mxu0 0.0
  %154 = vmatprep.subr.mxu0 0.0
  %155 = vmatpush2.msra.mxu0 0.0
  %156 = vmatprep.mubr.f32.mxu0 0.0
  %157 = vmatmul.mubr.f32.gmra.mxu0 %v90
  %v158 = vpop.f32.mrf.mxu0
  %v159 = vadd.f32 %v84, %v158
  %v160 = vpop.f32.mrf.mxu0
  %161 = vdwg.mxu0
  %v162 = vld [vmem:[%s3] sm:$0xff]
  %v163 = vld [vmem:[%s3 + $0x8] sm:$0xff]
  %v164 = vld [vmem:[%s3 + $0x10] sm:$0xff]
  %v165 = vld [vmem:[%s3 + $0x18] sm:$0xff]
  %v166 = vld [vmem:[%s3 + $0x20] sm:$0xff]
  %v167 = vld [vmem:[%s3 + $0x28] sm:$0xff]
  %v168 = vld [vmem:[%s3 + $0x30] sm:$0xff]
  %v169 = vld [vmem:[%s3 + $0x38] sm:$0xff]
  %v170 = vld [vmem:[%s4] sm:$0x1]
  %v172 = vlaneseq
  %v173 = vshrl.u32 %v172, 7
  %v174 = vsub.s32 0, %v173
  %v175 = vrot.slane %v170, %v174
  %vm177 = vcmask 523264
  %v179 = vsel %vm177, %v159, 0
  %181 = vmatprep.subr.mxu0 0.0
  %182 = vmatpush1.msra.mxu0 0.0
  %183 = vmatprep.subr.mxu0 0.0
  %184 = vmatpush1.msra.mxu0 0.0
  %185 = vmatprep.subr.mxu0 0.0
  %186 = vmatpush1.msra.mxu0 0.0
  %187 = vmatprep.subr.mxu0 0.0
  %188 = vmatpush1.msra.mxu0 0.0
  %189 = vmatprep.subr.mxu0 0.0
  %190 = vmatpush1.msra.mxu0 0.0
  %191 = vmatprep.subr.mxu0 0.0
  %192 = vmatpush1.msra.mxu0 0.0
  %193 = vmatprep.subr.mxu0 0.0
  %194 = vmatpush1.msra.mxu0 0.0
  %195 = vmatprep.subr.mxu0 0.0
  %196 = vmatpush1.msra.mxu0 0.0
  %197 = vmatprep.subr.mxu0 0.0
  %198 = vmatpush1.msra.mxu0 %v169
  %199 = vmatprep.subr.mxu0 0.0
  %200 = vmatpush1.msra.mxu0 %v168
  %201 = vmatprep.subr.mxu0 0.0
  %202 = vmatpush1.msra.mxu0 %v167
  %203 = vmatprep.subr.mxu0 0.0
  %204 = vmatpush1.msra.mxu0 %v166
  %205 = vmatprep.subr.mxu0 0.0
  %206 = vmatpush1.msra.mxu0 %v165
  %207 = vmatprep.subr.mxu0 0.0
  %208 = vmatpush1.msra.mxu0 %v164
  %209 = vmatprep.subr.mxu0 0.0
  %210 = vmatpush1.msra.mxu0 %v163
  %211 = vmatprep.subr.mxu0 0.0
  %212 = vmatpush1.msra.mxu0 %v162
  %213 = vmatprep.subr.mxu0 0.0
  %214 = vmatpush2.msra.mxu0 0.0
  %215 = vmatprep.subr.mxu0 0.0
  %216 = vmatpush2.msra.mxu0 0.0
  %217 = vmatprep.subr.mxu0 0.0
  %218 = vmatpush2.msra.mxu0 0.0
  %219 = vmatprep.subr.mxu0 0.0
  %220 = vmatpush2.msra.mxu0 0.0
  %221 = vmatprep.subr.mxu0 0.0
  %222 = vmatpush2.msra.mxu0 0.0
  %223 = vmatprep.subr.mxu0 0.0
  %224 = vmatpush2.msra.mxu0 0.0
  %225 = vmatprep.subr.mxu0 0.0
  %226 = vmatpush2.msra.mxu0 0.0
  %227 = vmatprep.subr.mxu0 0.0
  %228 = vmatpush2.msra.mxu0 0.0
  %229 = vmatprep.subr.mxu0 0.0
  %230 = vmatpush2.msra.mxu0 0.0
  %231 = vmatprep.subr.mxu0 0.0
  %232 = vmatpush2.msra.mxu0 0.0
  %233 = vmatprep.subr.mxu0 0.0
  %234 = vmatpush2.msra.mxu0 0.0
  %235 = vmatprep.subr.mxu0 0.0
  %236 = vmatpush2.msra.mxu0 0.0
  %237 = vmatprep.subr.mxu0 0.0
  %238 = vmatpush2.msra.mxu0 0.0
  %239 = vmatprep.subr.mxu0 0.0
  %240 = vmatpush2.msra.mxu0 0.0
  %241 = vmatprep.subr.mxu0 0.0
  %242 = vmatpush2.msra.mxu0 0.0
  %243 = vmatprep.subr.mxu0 0.0
  %244 = vmatpush2.msra.mxu0 0.0
  %245 = vmatprep.mubr.f32.mxu0 0.0
  %246 = vmatmul.mubr.f32.gmra.mxu0 %v179
  %v247 = vpop.f32.mrf.mxu0
  %v248 = vadd.f32 %v175, %v247
  %v249 = vpop.f32.mrf.mxu0
  %250 = vdwg.mxu0
  %v251 = vmul.f32 %v248, 0.5
  %v252 = vmul.f32 %v248, 0.70710677
  %v253 = verf.f32.pop %v252
  %v254 = vadd.f32 %v253, 1.0
  %v255 = vmul.f32 %v251, %v254
  %v256 = vld [vmem:[%s5] sm:$0xff]
  %v257 = vld [vmem:[%s5 + $0x8] sm:$0xff]
  %v258 = vld [vmem:[%s6] sm:$0x1]
  %v260 = vlaneseq
  %v261 = vshrl.u32 %v260, 7
  %v262 = vsub.s32 0, %v261
  %v263 = vrot.slane %v258, %v262
  %v267 = vsel %vm88, %v76, %v67
  %v268 = vsel %vm36, %v267, 0
  %270 = vmatprep.subr.mxu0 0.0
  %271 = vmatpush1.msra.mxu0 0.0
  %272 = vmatprep.subr.mxu0 0.0
  %273 = vmatpush1.msra.mxu0 0.0
  %274 = vmatprep.subr.mxu0 0.0
  %275 = vmatpush1.msra.mxu0 0.0
  %276 = vmatprep.subr.mxu0 0.0
  %277 = vmatpush1.msra.mxu0 0.0
  %278 = vmatprep.subr.mxu0 0.0
  %279 = vmatpush1.msra.mxu0 0.0
  %280 = vmatprep.subr.mxu0 0.0
  %281 = vmatpush1.msra.mxu0 0.0
  %282 = vmatprep.subr.mxu0 0.0
  %283 = vmatpush1.msra.mxu0 0.0
  %284 = vmatprep.subr.mxu0 0.0
  %285 = vmatpush1.msra.mxu0 0.0
  %286 = vmatprep.subr.mxu0 0.0
  %287 = vmatpush1.msra.mxu0 0.0
  %288 = vmatprep.subr.mxu0 0.0
  %289 = vmatpush1.msra.mxu0 0.0
  %290 = vmatprep.subr.mxu0 0.0
  %291 = vmatpush1.msra.mxu0 0.0
  %292 = vmatprep.subr.mxu0 0.0
  %293 = vmatpush1.msra.mxu0 0.0
  %294 = vmatprep.subr.mxu0 0.0
  %295 = vmatpush1.msra.mxu0 0.0
  %296 = vmatprep.subr.mxu0 0.0
  %297 = vmatpush1.msra.mxu0 0.0
  %298 = vmatprep.subr.mxu0 0.0
  %299 = vmatpush1.msra.mxu0 %v257
  %300 = vmatprep.subr.mxu0 0.0
  %301 = vmatpush1.msra.mxu0 %v256
  %302 = vmatprep.subr.mxu0 0.0
  %303 = vmatpush2.msra.mxu0 0.0
  %304 = vmatprep.subr.mxu0 0.0
  %305 = vmatpush2.msra.mxu0 0.0
  %306 = vmatprep.subr.mxu0 0.0
  %307 = vmatpush2.msra.mxu0 0.0
  %308 = vmatprep.subr.mxu0 0.0
  %309 = vmatpush2.msra.mxu0 0.0
  %310 = vmatprep.subr.mxu0 0.0
  %311 = vmatpush2.msra.mxu0 0.0
  %312 = vmatprep.subr.mxu0 0.0
  %313 = vmatpush2.msra.mxu0 0.0
  %314 = vmatprep.subr.mxu0 0.0
  %315 = vmatpush2.msra.mxu0 0.0
  %316 = vmatprep.subr.mxu0 0.0
  %317 = vmatpush2.msra.mxu0 0.0
  %318 = vmatprep.subr.mxu0 0.0
  %319 = vmatpush2.msra.mxu0 0.0
  %320 = vmatprep.subr.mxu0 0.0
  %321 = vmatpush2.msra.mxu0 0.0
  %322 = vmatprep.subr.mxu0 0.0
  %323 = vmatpush2.msra.mxu0 0.0
  %324 = vmatprep.subr.mxu0 0.0
  %325 = vmatpush2.msra.mxu0 0.0
  %326 = vmatprep.subr.mxu0 0.0
  %327 = vmatpush2.msra.mxu0 0.0
  %328 = vmatprep.subr.mxu0 0.0
  %329 = vmatpush2.msra.mxu0 0.0
  %330 = vmatprep.subr.mxu0 0.0
  %331 = vmatpush2.msra.mxu0 0.0
  %332 = vmatprep.subr.mxu0 0.0
  %333 = vmatpush2.msra.mxu0 0.0
  %334 = vmatprep.mubr.f32.mxu0 0.0
  %335 = vmatmul.mubr.f32.gmra.mxu0 %v268
  %v336 = vpop.f32.mrf.mxu0
  %v337 = vadd.f32 %v263, %v336
  %v338 = vpop.f32.mrf.mxu0
  %339 = vdwg.mxu0
  %v340 = vld [vmem:[%s7] sm:$0xff]
  %v341 = vld [vmem:[%s7 + $0x8] sm:$0xff]
  %v342 = vld [vmem:[%s7 + $0x10] sm:$0xff]
  %v343 = vld [vmem:[%s7 + $0x18] sm:$0xff]
  %v344 = vld [vmem:[%s7 + $0x20] sm:$0xff]
  %v345 = vld [vmem:[%s7 + $0x28] sm:$0xff]
  %v346 = vld [vmem:[%s7 + $0x30] sm:$0xff]
  %v347 = vld [vmem:[%s7 + $0x38] sm:$0xff]
  %v348 = vld [vmem:[%s8] sm:$0x1]
  %v350 = vlaneseq
  %v351 = vshrl.u32 %v350, 7
  %v352 = vsub.s32 0, %v351
  %v353 = vrot.slane %v348, %v352
  %v356 = vsel %vm177, %v337, 0
  %358 = vmatprep.subr.mxu0 0.0
  %359 = vmatpush1.msra.mxu0 0.0
  %360 = vmatprep.subr.mxu0 0.0
  %361 = vmatpush1.msra.mxu0 0.0
  %362 = vmatprep.subr.mxu0 0.0
  %363 = vmatpush1.msra.mxu0 0.0
  %364 = vmatprep.subr.mxu0 0.0
  %365 = vmatpush1.msra.mxu0 0.0
  %366 = vmatprep.subr.mxu0 0.0
  %367 = vmatpush1.msra.mxu0 0.0
  %368 = vmatprep.subr.mxu0 0.0
  %369 = vmatpush1.msra.mxu0 0.0
  %370 = vmatprep.subr.mxu0 0.0
  %371 = vmatpush1.msra.mxu0 0.0
  %372 = vmatprep.subr.mxu0 0.0
  %373 = vmatpush1.msra.mxu0 0.0
  %374 = vmatprep.subr.mxu0 0.0
  %375 = vmatpush1.msra.mxu0 %v347
  %376 = vmatprep.subr.mxu0 0.0
  %377 = vmatpush1.msra.mxu0 %v346
  %378 = vmatprep.subr.mxu0 0.0
  %379 = vmatpush1.msra.mxu0 %v345
  %380 = vmatprep.subr.mxu0 0.0
  %381 = vmatpush1.msra.mxu0 %v344
  %382 = vmatprep.subr.mxu0 0.0
  %383 = vmatpush1.msra.mxu0 %v343
  %384 = vmatprep.subr.mxu0 0.0
  %385 = vmatpush1.msra.mxu0 %v342
  %386 = vmatprep.subr.mxu0 0.0
  %387 = vmatpush1.msra.mxu0 %v341
  %388 = vmatprep.subr.mxu0 0.0
  %389 = vmatpush1.msra.mxu0 %v340
  %390 = vmatprep.subr.mxu0 0.0
  %391 = vmatpush2.msra.mxu0 0.0
  %392 = vmatprep.subr.mxu0 0.0
  %393 = vmatpush2.msra.mxu0 0.0
  %394 = vmatprep.subr.mxu0 0.0
  %395 = vmatpush2.msra.mxu0 0.0
  %396 = vmatprep.subr.mxu0 0.0
  %397 = vmatpush2.msra.mxu0 0.0
  %398 = vmatprep.subr.mxu0 0.0
  %399 = vmatpush2.msra.mxu0 0.0
  %400 = vmatprep.subr.mxu0 0.0
  %401 = vmatpush2.msra.mxu0 0.0
  %402 = vmatprep.subr.mxu0 0.0
  %403 = vmatpush2.msra.mxu0 0.0
  %404 = vmatprep.subr.mxu0 0.0
  %405 = vmatpush2.msra.mxu0 0.0
  %406 = vmatprep.subr.mxu0 0.0
  %407 = vmatpush2.msra.mxu0 0.0
  %408 = vmatprep.subr.mxu0 0.0
  %409 = vmatpush2.msra.mxu0 0.0
  %410 = vmatprep.subr.mxu0 0.0
  %411 = vmatpush2.msra.mxu0 0.0
  %412 = vmatprep.subr.mxu0 0.0
  %413 = vmatpush2.msra.mxu0 0.0
  %414 = vmatprep.subr.mxu0 0.0
  %415 = vmatpush2.msra.mxu0 0.0
  %416 = vmatprep.subr.mxu0 0.0
  %417 = vmatpush2.msra.mxu0 0.0
  %418 = vmatprep.subr.mxu0 0.0
  %419 = vmatpush2.msra.mxu0 0.0
  %420 = vmatprep.subr.mxu0 0.0
  %421 = vmatpush2.msra.mxu0 0.0
  %422 = vmatprep.mubr.f32.mxu0 0.0
  %423 = vmatmul.mubr.f32.gmra.mxu0 %v356
  %v424 = vpop.f32.mrf.mxu0
  %v425 = vadd.f32 %v353, %v424
  %v426 = vpop.f32.mrf.mxu0
  %427 = vdwg.mxu0
  %v428 = vmul.f32 %v425, 0.5
  %v429 = vmul.f32 %v425, 0.70710677
  %v430 = verf.f32.pop %v429
  %v431 = vadd.f32 %v430, 1.0
  %v432 = vmul.f32 %v428, %v431
  %v433 = vadd.f32 %v255, 1.0
  %v434 = vadd.f32 %v433, %v432
  %v437 = vunpack.c.l.s4 1966171168
  %v438 = vunpack.c.0.s8 %v437
  %v439 = vlaneseq
  %v440 = vshrl.u32 %v439, 7
  %v441 = vsub.s32 %v438, %v440
  %v442 = vrot.slane %v434, %v441
  %v443 = vcombine.high %v442, %v442
  %v445 = vunpack.c.l.s4 1966171168
  %v446 = vunpack.c.0.s8 %v445
  %v447 = vlaneseq
  %v448 = vshrl.u32 %v447, 7
  %v449 = vsub.s32 %v446, %v448
  %v450 = vrot.slane %v442, %v449
  %v452 = vunpack.c.l.s4 1966171168
  %v453 = vunpack.c.0.s8 %v452
  %v454 = vlaneseq
  %v455 = vshrl.u32 %v454, 7
  %v456 = vsub.s32 %v453, %v455
  %v457 = vrot.slane %v443, %v456
  %v458 = vlaneseq
  %v459 = vshrl.u32 %v458, 7
  %v460 = vsub.s32 0, %v459
  %v461 = vrot.slane %v450, %v460
  %v462 = vlaneseq
  %v463 = vshrl.u32 %v462, 7
  %v464 = vsub.s32 0, %v463
  %v465 = vrot.slane %v457, %v464
  %v468 = vmul.f32 %v32, %v461
  %v469 = vmul.f32 %v33, %v461
  %v470 = vmul.f32 %v34, %v465
  %v471 = vmul.f32 %v35, %v465
  %472 = vst.msk [vmem:[%s9] sm:$0xff] %vm36, %v468
  %473 = vst.msk [vmem:[%s9 + $0x8] sm:$0xf] %vm38, %v469
  %474 = vst.msk [vmem:[%s9 + $0x10] sm:$0xff] %vm36, %v470
  %475 = vst.msk [vmem:[%s9 + $0x18] sm:$0xf] %vm38, %v471
  // Predicated region
  $region38: #{tpu_custom_call.1} parent=0 // pred_check
    _
  $region39: #{tpu_custom_call.1} parent=0 // pred_check_branch
    %477 = sbr.rel (0) target = $region41
  $region40: #{tpu_custom_call.1} parent=0 // pred_region
    _
  $region41: #{tpu_custom_call.1} parent=0 // pred_fallthru
    _
  // Predicated region
  $region42: #{tpu_custom_call.1} parent=0 // pred_check
    _
  $region43: #{tpu_custom_call.1} parent=0 // pred_check_branch
    %479 = sbr.rel (0) target = $region45
  $region44: #{tpu_custom_call.1} parent=0 // pred_region
    _
  $region45: #{tpu_custom_call.1} parent=0 // pred_fallthru
    _

</llo_original>
